<compile_context>
chip_gen: v6e
topology: v6e:2x2x1
jax: 0.10.0
libtpu: 0.0.40
codegen_flags: <defaults>
</compile_context>

<pallas_src>
import functools

import jax
import jax.numpy as jnp
from jax.experimental import pallas as pl
from jax.experimental.pallas import tpu as pltpu

# Module hyper-parameters (globals in the original script) — small synthetic sizes.
STATE_SIZE = 28
ACTION_SIZE = 4
INPUT_SIZE = STATE_SIZE + ACTION_SIZE   # input_size (= first Linear fan_in)
LAYER1 = 64                             # layer1
LAYER2 = 64                             # layer2
OUTPUT_SIZE = 8                         # output_size

PAD = 128                               # lane-aligned padded feature width
BATCH = 256                             # rows per call (amortizes launch/DMA)
TM = 128                                # rows per grid step

NEG_SLOPE = 0.01  # F.leaky_relu default negative_slope


def _leaky_relu(x):
    return jnp.where(x > 0, x, NEG_SLOPE * x)


def dqn_kernel(s_ref, a_ref, w1s_ref, w1a_ref, b1_ref,
               w2_ref, b2_ref, w3_ref, b3_ref, o_ref):
    # Fused 3-layer MLP on one (TM, *) row tile.  The concat is folded into the
    # first layer as a split matmul; all feature dims are 128-lane padded so
    # each dot is a dense MXU op and the final store is an unmasked vst.
    h1 = (jnp.dot(s_ref[...], w1s_ref[...], preferred_element_type=jnp.float32)
          + jnp.dot(a_ref[...], w1a_ref[...], preferred_element_type=jnp.float32)
          + b1_ref[...])
    h1 = _leaky_relu(h1)
    h2 = jnp.dot(h1, w2_ref[...], preferred_element_type=jnp.float32) + b2_ref[...]
    h2 = _leaky_relu(h2)
    out = jnp.dot(h2, w3_ref[...], preferred_element_type=jnp.float32) + b3_ref[...]
    o_ref[...] = out.astype(o_ref.dtype)


@functools.partial(jax.jit, static_argnames=("tm",))
def dqn_forward(states, actions, params, *, tm=TM):
    """states: (B, STATE_SIZE), actions: (B, ACTION_SIZE), float32.
    params: lane-padded, transposed-vs-PyTorch weights (see init_params)."""
    w1s, w1a, b1 = params["w1s"], params["w1a"], params["b1"]
    w2, b2 = params["w2"], params["b2"]
    w3, b3 = params["w3"], params["b3"]

    states = states.astype(jnp.float32)
    actions = actions.astype(jnp.float32)

    B = states.shape[0]
    M = int(pl.cdiv(B, tm)) * tm
    if M != B:  # pad rows up to a whole number of TM tiles
        states = jnp.pad(states, ((0, M - B), (0, 0)))
        actions = jnp.pad(actions, ((0, M - B), (0, 0)))

    row_spec = lambda width: pl.BlockSpec((tm, width), lambda i: (i, 0))
    resident = lambda arr: pl.BlockSpec(arr.shape, lambda i: (0, 0))  # VMEM-resident weights

    out_padded = pl.pallas_call(
        dqn_kernel,
        out_shape=jax.ShapeDtypeStruct((M, PAD), jnp.float32),
        grid=(M // tm,),
        in_specs=[
            row_spec(STATE_SIZE),
            row_spec(ACTION_SIZE),
            resident(w1s), resident(w1a), resident(b1),
            resident(w2), resident(b2),
            resident(w3), resident(b3),
        ],
        out_specs=row_spec(PAD),
        compiler_params=pltpu.CompilerParams(
            dimension_semantics=("parallel",)),   # v7x: shard row tiles over both TCs
    )(states, actions, w1s, w1a, b1, w2, b2, w3, b3)

    return out_padded[:B, :OUTPUT_SIZE]


def dqn_call(states, actions, params):
    """Mirrors DQN.__call__ semantics (cat(states, actions).float() -> forward)
    without materializing the concat: it is folded into the first matmul."""
    return dqn_forward(states, actions, params)


def init_params(key):
    """Deterministic init mirroring nn.Linear's U(-1/sqrt(fan_in), 1/sqrt(fan_in)).
    Weights are stored as (in, out) = PyTorch weight.T, W1 split along its input
    dim into state/action halves, and all hidden/output dims zero-padded to PAD."""
    def linear(key, fan_in, fan_out):
        kw, kb = jax.random.split(key)
        bound = 1.0 / jnp.sqrt(fan_in)
        w = jax.random.uniform(kw, (fan_in, fan_out), jnp.float32, -bound, bound)
        b = jax.random.uniform(kb, (1, fan_out), jnp.float32, -bound, bound)
        return w, b

    k1, k2, k3 = jax.random.split(key, 3)
    w1, b1 = linear(k1, INPUT_SIZE, LAYER1)
    w2, b2 = linear(k2, LAYER1, LAYER2)
    w3, b3 = linear(k3, LAYER2, OUTPUT_SIZE)

    pad_cols = lambda a, n: jnp.pad(a, ((0, 0), (0, n - a.shape[1])))
    pad_rows = lambda a, n: jnp.pad(a, ((0, n - a.shape[0]), (0, 0)))

    return {
        # layer 1: split by input (states | actions), pad out-dim 64 -> 128
        "w1s": pad_cols(w1[:STATE_SIZE], PAD),
        "w1a": pad_cols(w1[STATE_SIZE:], PAD),
        "b1":  pad_cols(b1, PAD),
        # layer 2: pad both dims 64 -> 128 (padded rows meet zero activations)
        "w2":  pad_cols(pad_rows(w2, PAD), PAD),
        "b2":  pad_cols(b2, PAD),
        # output layer: pad in-dim 64 -> 128, out-dim 8 -> 128
        "w3":  pad_cols(pad_rows(w3, PAD), PAD),
        "b3":  pad_cols(b3, PAD),
    }


def dqn_ref(states, actions, p):
    """Pure-JAX reference on the same (padded) params."""
    x = jnp.concatenate([states, actions], axis=1).astype(jnp.float32)
    w1 = jnp.concatenate([p["w1s"], p["w1a"]], axis=0)
    h = _leaky_relu(x @ w1 + p["b1"])
    h = _leaky_relu(h @ p["w2"] + p["b2"])
    return (h @ p["w3"] + p["b3"])[:, :OUTPUT_SIZE]


if __name__ == "__main__":
    key = jax.random.PRNGKey(0)
    kp, ks, ka = jax.random.split(key, 3)
    params = init_params(kp)
    states = jax.random.normal(ks, (BATCH, STATE_SIZE), jnp.float32)
    actions = jax.random.normal(ka, (BATCH, ACTION_SIZE), jnp.float32)

    out = dqn_call(states, actions, params)
    out = jax.block_until_ready(out)

    ref = dqn_ref(states, actions, params)
    assert out.shape == (BATCH, OUTPUT_SIZE)
    assert jnp.allclose(out, ref, atol=1e-4, rtol=1e-4)
    print("KERNEL_OK")
</pallas_src>

<mosaic_0001>
module attributes {stable_mosaic.version = 11 : i64} {
  func.func @dqn_kernel(%arg0: i32, %arg1: memref<128x28xf32, #tpu.memory_space<vmem>>, %arg2: memref<128x4xf32, #tpu.memory_space<vmem>>, %arg3: memref<28x128xf32, #tpu.memory_space<vmem>>, %arg4: memref<4x128xf32, #tpu.memory_space<vmem>>, %arg5: memref<1x128xf32, #tpu.memory_space<vmem>>, %arg6: memref<128x128xf32, #tpu.memory_space<vmem>>, %arg7: memref<1x128xf32, #tpu.memory_space<vmem>>, %arg8: memref<128x128xf32, #tpu.memory_space<vmem>>, %arg9: memref<1x128xf32, #tpu.memory_space<vmem>>, %arg10: memref<128x128xf32, #tpu.memory_space<vmem>>) attributes {dimension_semantics = [#tpu.dimension_semantics<parallel>], iteration_bounds = array<i64: 2>, scalar_prefetch = 0 : i64, scratch_operands = 0 : i64, tpu.core_type = #tpu.core_type<tc>, window_params = [{transform_indices = @transform_0, window_bounds = array<i64: 128, 28>}, {transform_indices = @transform_1, window_bounds = array<i64: 128, 4>}, {pipeline_mode = #tpu.pipeline_mode<synchronous>, transform_indices = @transform_2, window_bounds = array<i64: 28, 128>}, {pipeline_mode = #tpu.pipeline_mode<synchronous>, transform_indices = @transform_3, window_bounds = array<i64: 4, 128>}, {pipeline_mode = #tpu.pipeline_mode<synchronous>, transform_indices = @transform_4, window_bounds = array<i64: 1, 128>}, {pipeline_mode = #tpu.pipeline_mode<synchronous>, transform_indices = @transform_5, window_bounds = array<i64: 128, 128>}, {pipeline_mode = #tpu.pipeline_mode<synchronous>, transform_indices = @transform_6, window_bounds = array<i64: 1, 128>}, {pipeline_mode = #tpu.pipeline_mode<synchronous>, transform_indices = @transform_7, window_bounds = array<i64: 128, 128>}, {pipeline_mode = #tpu.pipeline_mode<synchronous>, transform_indices = @transform_8, window_bounds = array<i64: 1, 128>}, {transform_indices = @transform_9, window_bounds = array<i64: 128, 128>}]} {
    %c0 = arith.constant 0 : index
    %c0_0 = arith.constant 0 : index
    %0 = vector.load %arg1[%c0, %c0_0] : memref<128x28xf32, #tpu.memory_space<vmem>>, vector<128x28xf32>
    %c0_1 = arith.constant 0 : index
    %c0_2 = arith.constant 0 : index
    %1 = vector.load %arg3[%c0_1, %c0_2] : memref<28x128xf32, #tpu.memory_space<vmem>>, vector<28x128xf32>
    %cst = arith.constant dense<0.000000e+00> : vector<128x128xf32>
    %2 = tpu.matmul %0, %1, %cst {dimension_numbers = #tpu.dot_dimension_numbers<[1], [0], [0], [1], [0, 0, 1, 1], [], []>} : vector<128x28xf32>, vector<28x128xf32>, vector<128x128xf32> -> vector<128x128xf32>
    %c0_3 = arith.constant 0 : index
    %c0_4 = arith.constant 0 : index
    %3 = vector.load %arg2[%c0_3, %c0_4] : memref<128x4xf32, #tpu.memory_space<vmem>>, vector<128x4xf32>
    %c0_5 = arith.constant 0 : index
    %c0_6 = arith.constant 0 : index
    %4 = vector.load %arg4[%c0_5, %c0_6] : memref<4x128xf32, #tpu.memory_space<vmem>>, vector<4x128xf32>
    %cst_7 = arith.constant dense<0.000000e+00> : vector<128x128xf32>
    %5 = tpu.matmul %3, %4, %cst_7 {dimension_numbers = #tpu.dot_dimension_numbers<[1], [0], [0], [1], [0, 0, 1, 1], [], []>} : vector<128x4xf32>, vector<4x128xf32>, vector<128x128xf32> -> vector<128x128xf32>
    %6 = arith.addf %2, %5 : vector<128x128xf32>
    %c0_8 = arith.constant 0 : index
    %c0_9 = arith.constant 0 : index
    %7 = vector.load %arg5[%c0_8, %c0_9] : memref<1x128xf32, #tpu.memory_space<vmem>>, vector<1x128xf32>
    %8 = vector.broadcast %7 : vector<1x128xf32> to vector<128x128xf32>
    %9 = arith.addf %6, %8 : vector<128x128xf32>
    %cst_10 = arith.constant 0.000000e+00 : f32
    %10 = vector.broadcast %cst_10 : f32 to vector<128x128xf32>
    %11 = arith.cmpf ogt, %9, %10 : vector<128x128xf32>
    %cst_11 = arith.constant 0.00999999977 : f32
    %12 = vector.broadcast %cst_11 : f32 to vector<128x128xf32>
    %13 = arith.mulf %12, %9 : vector<128x128xf32>
    %14 = arith.select %11, %9, %13 : vector<128x128xi1>, vector<128x128xf32>
    %c0_12 = arith.constant 0 : index
    %c0_13 = arith.constant 0 : index
    %15 = vector.load %arg6[%c0_12, %c0_13] : memref<128x128xf32, #tpu.memory_space<vmem>>, vector<128x128xf32>
    %cst_14 = arith.constant dense<0.000000e+00> : vector<128x128xf32>
    %16 = tpu.matmul %14, %15, %cst_14 {dimension_numbers = #tpu.dot_dimension_numbers<[1], [0], [0], [1], [0, 0, 1, 1], [], []>} : vector<128x128xf32>, vector<128x128xf32>, vector<128x128xf32> -> vector<128x128xf32>
    %c0_15 = arith.constant 0 : index
    %c0_16 = arith.constant 0 : index
    %17 = vector.load %arg7[%c0_15, %c0_16] : memref<1x128xf32, #tpu.memory_space<vmem>>, vector<1x128xf32>
    %18 = vector.broadcast %17 : vector<1x128xf32> to vector<128x128xf32>
    %19 = arith.addf %16, %18 : vector<128x128xf32>
    %cst_17 = arith.constant 0.000000e+00 : f32
    %20 = vector.broadcast %cst_17 : f32 to vector<128x128xf32>
    %21 = arith.cmpf ogt, %19, %20 : vector<128x128xf32>
    %cst_18 = arith.constant 0.00999999977 : f32
    %22 = vector.broadcast %cst_18 : f32 to vector<128x128xf32>
    %23 = arith.mulf %22, %19 : vector<128x128xf32>
    %24 = arith.select %21, %19, %23 : vector<128x128xi1>, vector<128x128xf32>
    %c0_19 = arith.constant 0 : index
    %c0_20 = arith.constant 0 : index
    %25 = vector.load %arg8[%c0_19, %c0_20] : memref<128x128xf32, #tpu.memory_space<vmem>>, vector<128x128xf32>
    %cst_21 = arith.constant dense<0.000000e+00> : vector<128x128xf32>
    %26 = tpu.matmul %24, %25, %cst_21 {dimension_numbers = #tpu.dot_dimension_numbers<[1], [0], [0], [1], [0, 0, 1, 1], [], []>} : vector<128x128xf32>, vector<128x128xf32>, vector<128x128xf32> -> vector<128x128xf32>
    %c0_22 = arith.constant 0 : index
    %c0_23 = arith.constant 0 : index
    %27 = vector.load %arg9[%c0_22, %c0_23] : memref<1x128xf32, #tpu.memory_space<vmem>>, vector<1x128xf32>
    %28 = vector.broadcast %27 : vector<1x128xf32> to vector<128x128xf32>
    %29 = arith.addf %26, %28 : vector<128x128xf32>
    %c0_24 = arith.constant 0 : index
    %c0_25 = arith.constant 0 : index
    %30 = vector.load %arg10[%c0_24, %c0_25] : memref<128x128xf32, #tpu.memory_space<vmem>>, vector<128x128xf32>
    tpu.vector_store %arg10[%c0_24, %c0_25], %29 {strides = array<i32>} : memref<128x128xf32, #tpu.memory_space<vmem>>, vector<128x128xf32>,
    return
  }
  func.func @transform_0(%arg0: i32) -> (i32, i32) {
    %c0_i32 = arith.constant 0 : i32
    %c0_i32_0 = arith.constant 0 : i32
    return %arg0, %c0_i32 : i32, i32
  }
  func.func @transform_1(%arg0: i32) -> (i32, i32) {
    %c0_i32 = arith.constant 0 : i32
    %c0_i32_0 = arith.constant 0 : i32
    return %arg0, %c0_i32 : i32, i32
  }
  func.func @transform_2(%arg0: i32) -> (i32, i32) {
    %c0_i32 = arith.constant 0 : i32
    %c0_i32_0 = arith.constant 0 : i32
    %c0_i32_1 = arith.constant 0 : i32
    return %c0_i32, %c0_i32_0 : i32, i32
  }
  func.func @transform_3(%arg0: i32) -> (i32, i32) {
    %c0_i32 = arith.constant 0 : i32
    %c0_i32_0 = arith.constant 0 : i32
    %c0_i32_1 = arith.constant 0 : i32
    return %c0_i32, %c0_i32_0 : i32, i32
  }
  func.func @transform_4(%arg0: i32) -> (i32, i32) {
    %c0_i32 = arith.constant 0 : i32
    %c0_i32_0 = arith.constant 0 : i32
    %c0_i32_1 = arith.constant 0 : i32
    return %c0_i32, %c0_i32_0 : i32, i32
  }
  func.func @transform_5(%arg0: i32) -> (i32, i32) {
    %c0_i32 = arith.constant 0 : i32
    %c0_i32_0 = arith.constant 0 : i32
    %c0_i32_1 = arith.constant 0 : i32
    return %c0_i32, %c0_i32_0 : i32, i32
  }
  func.func @transform_6(%arg0: i32) -> (i32, i32) {
    %c0_i32 = arith.constant 0 : i32
    %c0_i32_0 = arith.constant 0 : i32
    %c0_i32_1 = arith.constant 0 : i32
    return %c0_i32, %c0_i32_0 : i32, i32
  }
  func.func @transform_7(%arg0: i32) -> (i32, i32) {
    %c0_i32 = arith.constant 0 : i32
    %c0_i32_0 = arith.constant 0 : i32
    %c0_i32_1 = arith.constant 0 : i32
    return %c0_i32, %c0_i32_0 : i32, i32
  }
  func.func @transform_8(%arg0: i32) -> (i32, i32) {
    %c0_i32 = arith.constant 0 : i32
    %c0_i32_0 = arith.constant 0 : i32
    %c0_i32_1 = arith.constant 0 : i32
    return %c0_i32, %c0_i32_0 : i32, i32
  }
  func.func @transform_9(%arg0: i32) -> (i32, i32) {
    %c0_i32 = arith.constant 0 : i32
    %c0_i32_0 = arith.constant 0 : i32
    return %arg0, %c0_i32 : i32, i32
  }
}

</mosaic_0001>

<llo_original>
// kernel: dqn_forward.1
$region0: #{dqn_forward.1}
  #allocation0 [shape = 'u32[]', space=smem, size = 0x4, offset = 0x4, fixed_abs, tag = 'smem constant byte address 0x4 - core index']
  #allocation1 [shape = 'u32[144,128]{1,0:T(1,128)}', space=vmem, size = 0x12000, scoped, tag = 'internal scratch']
  %s0 = inlined_call_operand.vmem [shape: f32[256,28], index: 0, kind: input, shape index: {}]
  %s1 = inlined_call_operand.vmem [shape: f32[256,4], index: 1, kind: input, shape index: {}]
  %s2 = inlined_call_operand.vmem [shape: f32[28,128], index: 2, kind: input, shape index: {}]
  %s3 = inlined_call_operand.vmem [shape: f32[4,128], index: 3, kind: input, shape index: {}]
  %s4 = inlined_call_operand.vmem [shape: f32[1,128], index: 4, kind: input, shape index: {}]
  %s5 = inlined_call_operand.vmem [shape: f32[128,128], index: 5, kind: input, shape index: {}]
  %s6 = inlined_call_operand.vmem [shape: f32[1,128], index: 6, kind: input, shape index: {}]
  %s7 = inlined_call_operand.vmem [shape: f32[128,128], index: 7, kind: input, shape index: {}]
  %s8 = inlined_call_operand.vmem [shape: f32[1,128], index: 8, kind: input, shape index: {}]
  %s9 = inlined_call_operand.vmem [shape: f32[256,128], index: 9, kind: output, shape index: {}]
  %s10 = sld [smem:[#allocation0]]
  $region69: #{dqn_forward.1} parent=0
    _
  %s12 = ssub.s32 1, %s10
  %s13 = scalar_select 0, %s12, %s10
  loop: start=0, step=1, limit=4
  $region2: #{dqn_forward.1} parent=0 // loop_pre_header
    _
  $region3: #{dqn_forward.1} parent=0 // loop_header
    %s15 = sphi 0, %s19
    %p16 = scmp.ge.s32.totalorder %s15, 4
    %s25 = sphi 0, %s27
    %s28 = sphi 0, %s25
    %s29 = sphi 0, %s28
    %s45 = sphi 0, %s29
    %s51 = sphi 0, %s53
    %s54 = sphi 0, %s51
    %s55 = sphi 0, %s54
    %s71 = sphi 0, %s55
    %s75 = sphi 0, %s75
    %s77 = sphi 0, %s75
    %s78 = sphi 0, %s77
    %s92 = sphi 0, %s78
    %s96 = sphi 0, %s96
    %s98 = sphi 0, %s96
    %s99 = sphi 0, %s98
    %s113 = sphi 0, %s99
    %s117 = sphi 0, %s117
    %s119 = sphi 0, %s117
    %s120 = sphi 0, %s119
    %s134 = sphi 0, %s120
    %s138 = sphi 0, %s138
    %s140 = sphi 0, %s138
    %s141 = sphi 0, %s140
    %s155 = sphi 0, %s141
    %s159 = sphi 0, %s159
    %s161 = sphi 0, %s159
    %s162 = sphi 0, %s161
    %s176 = sphi 0, %s162
    %s180 = sphi 0, %s180
    %s182 = sphi 0, %s180
    %s183 = sphi 0, %s182
    %s197 = sphi 0, %s183
    %s201 = sphi 0, %s201
    %s203 = sphi 0, %s201
    %s204 = sphi 0, %s203
    %s218 = sphi 0, %s204
    %s224 = sphi 0, %s226
    %s227 = sphi 0, %s224
    %s228 = sphi 0, %s227
    %s244 = sphi 0, %s228
  $region4: #{dqn_forward.1} parent=0 // loop_header_branch
    %18 = sbr.rel (%p16) target = $region8
  $region5: #{dqn_forward.1} parent=0 // loop_body
    %s20 = ssub.s32 %s15, 1
    %s21 = ssub.s32 %s15, 2
    %s22 = sadd.s32 %s15, 1
    %s23 = ssub.s32 %s15, %s22
    %p24 = scmp.eq.s32.totalorder %s23, 0
    %s26 = sadd.s32 %s25, 1
    %s27 = scalar_select %p24, %s25, %s26
    %p30 = pneg %p24
    %p31 = scmp.eq.s32.totalorder %s15, 1
    %p32 = por %p30, %p31
    %p33 = scmp.ne.s32.totalorder %s25, %s28
    %p34 = scmp.eq.s32.totalorder %s15, 0
    %p35 = por %p33, %p34
    %p36 = scmp.ne.s32.totalorder %s25, %s28
    %p37 = scmp.eq.s32.totalorder %s20, 1
    %p38 = por %p36, %p37
    %p39 = scmp.ne.s32.totalorder %s28, %s29
    %p40 = scmp.eq.s32.totalorder %s20, 0
    %p41 = por %p39, %p40
    %p42 = scmp.ne.s32.totalorder %s28, %s29
    %p43 = scmp.eq.s32.totalorder %s21, 1
    %p44 = por %p42, %p43
    %p46 = scmp.ne.s32.totalorder %s29, %s45
    %p47 = scmp.eq.s32.totalorder %s21, 0
    %p48 = por %p46, %p47
    %s49 = ssub.s32 %s15, %s22
    %p50 = scmp.eq.s32.totalorder %s49, 0
    %s52 = sadd.s32 %s51, 1
    %s53 = scalar_select %p50, %s51, %s52
    %p56 = pneg %p50
    %p57 = scmp.eq.s32.totalorder %s15, 1
    %p58 = por %p56, %p57
    %p59 = scmp.ne.s32.totalorder %s51, %s54
    %p60 = scmp.eq.s32.totalorder %s15, 0
    %p61 = por %p59, %p60
    %p62 = scmp.ne.s32.totalorder %s51, %s54
    %p63 = scmp.eq.s32.totalorder %s20, 1
    %p64 = por %p62, %p63
    %p65 = scmp.ne.s32.totalorder %s54, %s55
    %p66 = scmp.eq.s32.totalorder %s20, 0
    %p67 = por %p65, %p66
    %p68 = scmp.ne.s32.totalorder %s54, %s55
    %p69 = scmp.eq.s32.totalorder %s21, 1
    %p70 = por %p68, %p69
    %p72 = scmp.ne.s32.totalorder %s55, %s71
    %p73 = scmp.eq.s32.totalorder %s21, 0
    %p74 = por %p72, %p73
    %s76 = sadd.s32 %s75, 1
    %p79 = scmp.eq.s32.totalorder %s15, 1
    %p80 = scmp.ne.s32.totalorder %s75, %s77
    %p81 = scmp.eq.s32.totalorder %s15, 0
    %p82 = por %p80, %p81
    %p83 = scmp.ne.s32.totalorder %s75, %s77
    %p84 = scmp.eq.s32.totalorder %s20, 1
    %p85 = por %p83, %p84
    %p86 = scmp.ne.s32.totalorder %s77, %s78
    %p87 = scmp.eq.s32.totalorder %s20, 0
    %p88 = por %p86, %p87
    %p89 = scmp.ne.s32.totalorder %s77, %s78
    %p90 = scmp.eq.s32.totalorder %s21, 1
    %p91 = por %p89, %p90
    %p93 = scmp.ne.s32.totalorder %s78, %s92
    %p94 = scmp.eq.s32.totalorder %s21, 0
    %p95 = por %p93, %p94
    %s97 = sadd.s32 %s96, 1
    %p100 = scmp.eq.s32.totalorder %s15, 1
    %p101 = scmp.ne.s32.totalorder %s96, %s98
    %p102 = scmp.eq.s32.totalorder %s15, 0
    %p103 = por %p101, %p102
    %p104 = scmp.ne.s32.totalorder %s96, %s98
    %p105 = scmp.eq.s32.totalorder %s20, 1
    %p106 = por %p104, %p105
    %p107 = scmp.ne.s32.totalorder %s98, %s99
    %p108 = scmp.eq.s32.totalorder %s20, 0
    %p109 = por %p107, %p108
    %p110 = scmp.ne.s32.totalorder %s98, %s99
    %p111 = scmp.eq.s32.totalorder %s21, 1
    %p112 = por %p110, %p111
    %p114 = scmp.ne.s32.totalorder %s99, %s113
    %p115 = scmp.eq.s32.totalorder %s21, 0
    %p116 = por %p114, %p115
    %s118 = sadd.s32 %s117, 1
    %p121 = scmp.eq.s32.totalorder %s15, 1
    %p122 = scmp.ne.s32.totalorder %s117, %s119
    %p123 = scmp.eq.s32.totalorder %s15, 0
    %p124 = por %p122, %p123
    %p125 = scmp.ne.s32.totalorder %s117, %s119
    %p126 = scmp.eq.s32.totalorder %s20, 1
    %p127 = por %p125, %p126
    %p128 = scmp.ne.s32.totalorder %s119, %s120
    %p129 = scmp.eq.s32.totalorder %s20, 0
    %p130 = por %p128, %p129
    %p131 = scmp.ne.s32.totalorder %s119, %s120
    %p132 = scmp.eq.s32.totalorder %s21, 1
    %p133 = por %p131, %p132
    %p135 = scmp.ne.s32.totalorder %s120, %s134
    %p136 = scmp.eq.s32.totalorder %s21, 0
    %p137 = por %p135, %p136
    %s139 = sadd.s32 %s138, 1
    %p142 = scmp.eq.s32.totalorder %s15, 1
    %p143 = scmp.ne.s32.totalorder %s138, %s140
    %p144 = scmp.eq.s32.totalorder %s15, 0
    %p145 = por %p143, %p144
    %p146 = scmp.ne.s32.totalorder %s138, %s140
    %p147 = scmp.eq.s32.totalorder %s20, 1
    %p148 = por %p146, %p147
    %p149 = scmp.ne.s32.totalorder %s140, %s141
    %p150 = scmp.eq.s32.totalorder %s20, 0
    %p151 = por %p149, %p150
    %p152 = scmp.ne.s32.totalorder %s140, %s141
    %p153 = scmp.eq.s32.totalorder %s21, 1
    %p154 = por %p152, %p153
    %p156 = scmp.ne.s32.totalorder %s141, %s155
    %p157 = scmp.eq.s32.totalorder %s21, 0
    %p158 = por %p156, %p157
    %s160 = sadd.s32 %s159, 1
    %p163 = scmp.eq.s32.totalorder %s15, 1
    %p164 = scmp.ne.s32.totalorder %s159, %s161
    %p165 = scmp.eq.s32.totalorder %s15, 0
    %p166 = por %p164, %p165
    %p167 = scmp.ne.s32.totalorder %s159, %s161
    %p168 = scmp.eq.s32.totalorder %s20, 1
    %p169 = por %p167, %p168
    %p170 = scmp.ne.s32.totalorder %s161, %s162
    %p171 = scmp.eq.s32.totalorder %s20, 0
    %p172 = por %p170, %p171
    %p173 = scmp.ne.s32.totalorder %s161, %s162
    %p174 = scmp.eq.s32.totalorder %s21, 1
    %p175 = por %p173, %p174
    %p177 = scmp.ne.s32.totalorder %s162, %s176
    %p178 = scmp.eq.s32.totalorder %s21, 0
    %p179 = por %p177, %p178
    %s181 = sadd.s32 %s180, 1
    %p184 = scmp.eq.s32.totalorder %s15, 1
    %p185 = scmp.ne.s32.totalorder %s180, %s182
    %p186 = scmp.eq.s32.totalorder %s15, 0
    %p187 = por %p185, %p186
    %p188 = scmp.ne.s32.totalorder %s180, %s182
    %p189 = scmp.eq.s32.totalorder %s20, 1
    %p190 = por %p188, %p189
    %p191 = scmp.ne.s32.totalorder %s182, %s183
    %p192 = scmp.eq.s32.totalorder %s20, 0
    %p193 = por %p191, %p192
    %p194 = scmp.ne.s32.totalorder %s182, %s183
    %p195 = scmp.eq.s32.totalorder %s21, 1
    %p196 = por %p194, %p195
    %p198 = scmp.ne.s32.totalorder %s183, %s197
    %p199 = scmp.eq.s32.totalorder %s21, 0
    %p200 = por %p198, %p199
    %s202 = sadd.s32 %s201, 1
    %p205 = scmp.eq.s32.totalorder %s15, 1
    %p206 = scmp.ne.s32.totalorder %s201, %s203
    %p207 = scmp.eq.s32.totalorder %s15, 0
    %p208 = por %p206, %p207
    %p209 = scmp.ne.s32.totalorder %s201, %s203
    %p210 = scmp.eq.s32.totalorder %s20, 1
    %p211 = por %p209, %p210
    %p212 = scmp.ne.s32.totalorder %s203, %s204
    %p213 = scmp.eq.s32.totalorder %s20, 0
    %p214 = por %p212, %p213
    %p215 = scmp.ne.s32.totalorder %s203, %s204
    %p216 = scmp.eq.s32.totalorder %s21, 1
    %p217 = por %p215, %p216
    %p219 = scmp.ne.s32.totalorder %s204, %s218
    %p220 = scmp.eq.s32.totalorder %s21, 0
    %p221 = por %p219, %p220
    %s222 = ssub.s32 %s15, %s22
    %p223 = scmp.eq.s32.totalorder %s222, 0
    %s225 = sadd.s32 %s224, 1
    %s226 = scalar_select %p223, %s224, %s225
    %p229 = pneg %p223
    %p230 = scmp.eq.s32.totalorder %s15, 1
    %p231 = por %p229, %p230
    %p232 = scmp.ne.s32.totalorder %s224, %s227
    %p233 = scmp.eq.s32.totalorder %s15, 0
    %p234 = por %p232, %p233
    %p235 = scmp.ne.s32.totalorder %s224, %s227
    %p236 = scmp.eq.s32.totalorder %s20, 1
    %p237 = por %p235, %p236
    %p238 = scmp.ne.s32.totalorder %s227, %s228
    %p239 = scmp.eq.s32.totalorder %s20, 0
    %p240 = por %p238, %p239
    %p241 = scmp.ne.s32.totalorder %s227, %s228
    %p242 = scmp.eq.s32.totalorder %s21, 1
    %p243 = por %p241, %p242
    %p245 = scmp.ne.s32.totalorder %s228, %s244
    %p246 = scmp.eq.s32.totalorder %s21, 0
    %p247 = por %p245, %p246
    %p248 = scmp.le.s32.totalorder 1, %s15
    %p249 = scmp.lt.s32.totalorder %s15, 3
    %p250 = pnand %p248, %p249
    %p251 = pneg %p250
    // Predicated region
    $region9: #{dqn_forward.1} parent=5 // pred_check
      _
    $region10: #{dqn_forward.1} parent=5 // pred_check_branch
      %253 = sbr.rel (%p250) target = $region12
    $region11: #{dqn_forward.1} parent=5 // pred_region
      %s254 = ssub.s32 %s15, 1
      // Predicated region
      $region13: #{dqn_forward.1} parent=11 // pred_check
        %p255 = pneg %p88
      $region14: #{dqn_forward.1} parent=11 // pred_check_branch
        %257 = sbr.rel (%p255) target = $region16
      $region15: #{dqn_forward.1} parent=11 // pred_region
        _
      $region16: #{dqn_forward.1} parent=11 // pred_fallthru
        _
      // Predicated region
      $region17: #{dqn_forward.1} parent=11 // pred_check
        %p258 = pneg %p109
      $region18: #{dqn_forward.1} parent=11 // pred_check_branch
        %260 = sbr.rel (%p258) target = $region20
      $region19: #{dqn_forward.1} parent=11 // pred_region
        _
      $region20: #{dqn_forward.1} parent=11 // pred_fallthru
        _
      // Predicated region
      $region21: #{dqn_forward.1} parent=11 // pred_check
        %p261 = pneg %p130
      $region22: #{dqn_forward.1} parent=11 // pred_check_branch
        %263 = sbr.rel (%p261) target = $region24
      $region23: #{dqn_forward.1} parent=11 // pred_region
        _
      $region24: #{dqn_forward.1} parent=11 // pred_fallthru
        _
      // Predicated region
      $region25: #{dqn_forward.1} parent=11 // pred_check
        %p264 = pneg %p151
      $region26: #{dqn_forward.1} parent=11 // pred_check_branch
        %266 = sbr.rel (%p264) target = $region28
      $region27: #{dqn_forward.1} parent=11 // pred_region
        _
      $region28: #{dqn_forward.1} parent=11 // pred_fallthru
        _
      // Predicated region
      $region29: #{dqn_forward.1} parent=11 // pred_check
        %p267 = pneg %p172
      $region30: #{dqn_forward.1} parent=11 // pred_check_branch
        %269 = sbr.rel (%p267) target = $region32
      $region31: #{dqn_forward.1} parent=11 // pred_region
        _
      $region32: #{dqn_forward.1} parent=11 // pred_fallthru
        _
      // Predicated region
      $region33: #{dqn_forward.1} parent=11 // pred_check
        %p270 = pneg %p193
      $region34: #{dqn_forward.1} parent=11 // pred_check_branch
        %272 = sbr.rel (%p270) target = $region36
      $region35: #{dqn_forward.1} parent=11 // pred_region
        _
      $region36: #{dqn_forward.1} parent=11 // pred_fallthru
        _
      // Predicated region
      $region37: #{dqn_forward.1} parent=11 // pred_check
        %p273 = pneg %p214
      $region38: #{dqn_forward.1} parent=11 // pred_check_branch
        %275 = sbr.rel (%p273) target = $region40
      $region39: #{dqn_forward.1} parent=11 // pred_region
        _
      $region40: #{dqn_forward.1} parent=11 // pred_fallthru
        _
    $region12: #{dqn_forward.1} parent=5 // pred_fallthru
      _
    %p276 = scmp.lt.s32.totalorder %s15, 2
    // Predicated region
    $region41: #{dqn_forward.1} parent=5 // pred_check
      %p277 = pneg %p276
    $region42: #{dqn_forward.1} parent=5 // pred_check_branch
      %279 = sbr.rel (%p277) target = $region44
    $region43: #{dqn_forward.1} parent=5 // pred_region
      // Predicated region
      $region45: #{dqn_forward.1} parent=43 // pred_check
        %p280 = pneg %p35
      $region46: #{dqn_forward.1} parent=43 // pred_check_branch
        %282 = sbr.rel (%p280) target = $region48
      $region47: #{dqn_forward.1} parent=43 // pred_region
        %s283 = smul.u32 16, %s15
        %p284 = scmp.lt.s32.totalorder %s283, 31
        %s285 = scalar_select %p284, %s283, 31
        %s286 = smul.addr %s285, 8
        %s287 = scalar_lea.vmem %s0, %s286
        %s288 = smul.u32 16, %s15
      $region48: #{dqn_forward.1} parent=43 // pred_fallthru
        _
      // Predicated region
      $region49: #{dqn_forward.1} parent=43 // pred_check
        %p289 = pneg %p61
      $region50: #{dqn_forward.1} parent=43 // pred_check_branch
        %291 = sbr.rel (%p289) target = $region52
      $region51: #{dqn_forward.1} parent=43 // pred_region
        %s292 = smul.u32 16, %s15
        %p293 = scmp.lt.s32.totalorder %s292, 31
        %s294 = scalar_select %p293, %s292, 31
        %s295 = smul.addr %s294, 8
        %s296 = scalar_lea.vmem %s1, %s295
        %s297 = smul.u32 16, %s15
      $region52: #{dqn_forward.1} parent=43 // pred_fallthru
        _
    $region44: #{dqn_forward.1} parent=5 // pred_fallthru
      _
    %p298 = scmp.le.s32.totalorder 1, %s15
    %p299 = scmp.lt.s32.totalorder %s15, 3
    %p300 = pnand %p298, %p299
    %p301 = pneg %p300
    // Predicated region
    $region53: #{dqn_forward.1} parent=5 // pred_check
      _
    $region54: #{dqn_forward.1} parent=5 // pred_check_branch
      %303 = sbr.rel (%p300) target = $region56
    $region55: #{dqn_forward.1} parent=5 // pred_region
      %s304 = ssub.s32 %s15, 1
      %s305 = smul.u32 16, %s20
      %p306 = scmp.lt.s32.totalorder %s305, 31
      %s307 = scalar_select %p306, %s305, 31
      %s308 = smul.addr %s307, 8
      %s309 = scalar_lea.vmem %s0, %s308
      %p310 = pneg %p41
      %p311 = pneg %p38
      %s312 = smul.u32 16, %s20
      %p313 = scmp.lt.s32.totalorder %s312, 31
      %s314 = scalar_select %p313, %s312, 31
      %s315 = smul.addr %s314, 8
      %s316 = scalar_lea.vmem %s1, %s315
      %p317 = pneg %p67
      %p318 = pneg %p64
      %p319 = pneg %p88
      %p320 = pneg %p85
      %p321 = pneg %p109
      %p322 = pneg %p106
      %p323 = pneg %p130
      %p324 = pneg %p127
      %p325 = pneg %p151
      %p326 = pneg %p148
      %p327 = pneg %p172
      %p328 = pneg %p169
      %p329 = pneg %p193
      %p330 = pneg %p190
      %p331 = pneg %p214
      %p332 = pneg %p211
      %p333 = pneg %p240
      %p334 = pneg %p237
      %s335 = smul.u32 16, %s20
      %p336 = scmp.lt.s32.totalorder %s335, 31
      %s337 = scalar_select %p336, %s335, 31
      %s338 = smul.addr %s337, 8
      %s339 = scalar_lea.vmem %s9, %s338
      %s340 = smul.u32 16, %s20
      %p341 = scmp.lt.s32.totalorder %s340, 31
      %s342 = scalar_select %p341, %s340, 31
      %s343 = smul.addr %s342, 8
      %s344 = scalar_lea.vmem %s0, %s343
      %s345 = smul.u32 16, %s20
      %s346 = smul.u32 16, %s20
      %p347 = scmp.lt.s32.totalorder %s346, 31
      %s348 = scalar_select %p347, %s346, 31
      %s349 = smul.addr %s348, 8
      %s350 = scalar_lea.vmem %s1, %s349
      %s351 = smul.u32 16, %s20
      %s352 = smul.u32 16, %s20
      %p353 = scmp.lt.s32.totalorder %s352, 31
      %s354 = scalar_select %p353, %s352, 31
      %s355 = smul.addr %s354, 8
      %s356 = scalar_lea.vmem %s9, %s355
      %s357 = smul.u32 16, %s20
      %v358 = vld [vmem:[%s344] sm:$0xff]
      %v359 = vld [vmem:[%s344 + $0x8] sm:$0xff]
      %v360 = vld [vmem:[%s344 + $0x10] sm:$0xff]
      %v361 = vld [vmem:[%s344 + $0x18] sm:$0xff]
      %v362 = vld [vmem:[%s344 + $0x20] sm:$0xff]
      %v363 = vld [vmem:[%s344 + $0x28] sm:$0xff]
      %v364 = vld [vmem:[%s344 + $0x30] sm:$0xff]
      %v365 = vld [vmem:[%s344 + $0x38] sm:$0xff]
      %v366 = vld [vmem:[%s344 + $0x40] sm:$0xff]
      %v367 = vld [vmem:[%s344 + $0x48] sm:$0xff]
      %v368 = vld [vmem:[%s344 + $0x50] sm:$0xff]
      %v369 = vld [vmem:[%s344 + $0x58] sm:$0xff]
      %v370 = vld [vmem:[%s344 + $0x60] sm:$0xff]
      %v371 = vld [vmem:[%s344 + $0x68] sm:$0xff]
      %v372 = vld [vmem:[%s344 + $0x70] sm:$0xff]
      %v373 = vld [vmem:[%s344 + $0x78] sm:$0xff]
      %v374 = vld [vmem:[%s2] sm:$0xff]
      %v375 = vld [vmem:[%s2 + $0x8] sm:$0xff]
      %v376 = vld [vmem:[%s2 + $0x10] sm:$0xff]
      %v377 = vld [vmem:[%s2 + $0x18] sm:$0xf]
      %v378 = vld [vmem:[%s350] sm:$0xff]
      %v379 = vld [vmem:[%s350 + $0x8] sm:$0xff]
      %v380 = vld [vmem:[%s350 + $0x10] sm:$0xff]
      %v381 = vld [vmem:[%s350 + $0x18] sm:$0xff]
      %v382 = vld [vmem:[%s350 + $0x20] sm:$0xff]
      %v383 = vld [vmem:[%s350 + $0x28] sm:$0xff]
      %v384 = vld [vmem:[%s350 + $0x30] sm:$0xff]
      %v385 = vld [vmem:[%s350 + $0x38] sm:$0xff]
      %v386 = vld [vmem:[%s350 + $0x40] sm:$0xff]
      %v387 = vld [vmem:[%s350 + $0x48] sm:$0xff]
      %v388 = vld [vmem:[%s350 + $0x50] sm:$0xff]
      %v389 = vld [vmem:[%s350 + $0x58] sm:$0xff]
      %v390 = vld [vmem:[%s350 + $0x60] sm:$0xff]
      %v391 = vld [vmem:[%s350 + $0x68] sm:$0xff]
      %v392 = vld [vmem:[%s350 + $0x70] sm:$0xff]
      %v393 = vld [vmem:[%s350 + $0x78] sm:$0xff]
      %v394 = vld [vmem:[%s3] sm:$0xf]
      %vm395 = vcmask 31744
      %v397 = vsel %vm395, %v378, 0
      %v400 = vsel %vm395, %v379, 0
      %v403 = vsel %vm395, %v380, 0
      %v406 = vsel %vm395, %v381, 0
      %v409 = vsel %vm395, %v382, 0
      %v412 = vsel %vm395, %v383, 0
      %v415 = vsel %vm395, %v384, 0
      %v418 = vsel %vm395, %v385, 0
      %v421 = vsel %vm395, %v386, 0
      %v424 = vsel %vm395, %v387, 0
      %v427 = vsel %vm395, %v388, 0
      %v430 = vsel %vm395, %v389, 0
      %v433 = vsel %vm395, %v390, 0
      %v436 = vsel %vm395, %v391, 0
      %v439 = vsel %vm395, %v392, 0
      %v442 = vsel %vm395, %v393, 0
      %vm444 = vcmask 1043456
      %v446 = vsel %vm444, %v394, 0
      %448 = vmatprep.subr.mxu0 0.0
      %449 = vmatpush1.msra.mxu0 0.0
      %450 = vmatprep.subr.mxu0 0.0
      %451 = vmatpush1.msra.mxu0 0.0
      %452 = vmatprep.subr.mxu0 0.0
      %453 = vmatpush1.msra.mxu0 0.0
      %454 = vmatprep.subr.mxu0 0.0
      %455 = vmatpush1.msra.mxu0 0.0
      %456 = vmatprep.subr.mxu0 0.0
      %457 = vmatpush1.msra.mxu0 0.0
      %458 = vmatprep.subr.mxu0 0.0
      %459 = vmatpush1.msra.mxu0 0.0
      %460 = vmatprep.subr.mxu0 0.0
      %461 = vmatpush1.msra.mxu0 0.0
      %462 = vmatprep.subr.mxu0 0.0
      %463 = vmatpush1.msra.mxu0 0.0
      %464 = vmatprep.subr.mxu0 0.0
      %465 = vmatpush1.msra.mxu0 0.0
      %466 = vmatprep.subr.mxu0 0.0
      %467 = vmatpush1.msra.mxu0 0.0
      %468 = vmatprep.subr.mxu0 0.0
      %469 = vmatpush1.msra.mxu0 0.0
      %470 = vmatprep.subr.mxu0 0.0
      %471 = vmatpush1.msra.mxu0 0.0
      %472 = vmatprep.subr.mxu0 0.0
      %473 = vmatpush1.msra.mxu0 0.0
      %474 = vmatprep.subr.mxu0 0.0
      %475 = vmatpush1.msra.mxu0 0.0
      %476 = vmatprep.subr.mxu0 0.0
      %477 = vmatpush1.msra.mxu0 0.0
      %478 = vmatprep.subr.mxu0 0.0
      %479 = vmatpush1.msra.mxu0 %v446
      %480 = vmatprep.subr.mxu0 0.0
      %481 = vmatpush2.msra.mxu0 0.0
      %482 = vmatprep.subr.mxu0 0.0
      %483 = vmatpush2.msra.mxu0 0.0
      %484 = vmatprep.subr.mxu0 0.0
      %485 = vmatpush2.msra.mxu0 0.0
      %486 = vmatprep.subr.mxu0 0.0
      %487 = vmatpush2.msra.mxu0 0.0
      %488 = vmatprep.subr.mxu0 0.0
      %489 = vmatpush2.msra.mxu0 0.0
      %490 = vmatprep.subr.mxu0 0.0
      %491 = vmatpush2.msra.mxu0 0.0
      %492 = vmatprep.subr.mxu0 0.0
      %493 = vmatpush2.msra.mxu0 0.0
      %494 = vmatprep.subr.mxu0 0.0
      %495 = vmatpush2.msra.mxu0 0.0
      %496 = vmatprep.subr.mxu0 0.0
      %497 = vmatpush2.msra.mxu0 0.0
      %498 = vmatprep.subr.mxu0 0.0
      %499 = vmatpush2.msra.mxu0 0.0
      %500 = vmatprep.subr.mxu0 0.0
      %501 = vmatpush2.msra.mxu0 0.0
      %502 = vmatprep.subr.mxu0 0.0
      %503 = vmatpush2.msra.mxu0 0.0
      %504 = vmatprep.subr.mxu0 0.0
      %505 = vmatpush2.msra.mxu0 0.0
      %506 = vmatprep.subr.mxu0 0.0
      %507 = vmatpush2.msra.mxu0 0.0
      %508 = vmatprep.subr.mxu0 0.0
      %509 = vmatpush2.msra.mxu0 0.0
      %510 = vmatprep.subr.mxu0 0.0
      %511 = vmatpush2.msra.mxu0 0.0
      %512 = vmatprep.mubr.f32.mxu0 0.0
      %513 = vmatmul.mubr.f32.gmra.mxu0 %v397
      %v514 = vpop.f32.mrf.mxu0
      %v515 = vadd.f32 0.0, %v514
      %v516 = vpop.f32.mrf.mxu0
      %517 = vmatprep.mubr.f32.mxu0 0.0
      %518 = vmatmul.mubr.f32.gmra.mxu0 %v400
      %v519 = vpop.f32.mrf.mxu0
      %v520 = vadd.f32 0.0, %v519
      %v521 = vpop.f32.mrf.mxu0
      %522 = vmatprep.mubr.f32.mxu0 0.0
      %523 = vmatmul.mubr.f32.gmra.mxu0 %v403
      %v524 = vpop.f32.mrf.mxu0
      %v525 = vadd.f32 0.0, %v524
      %v526 = vpop.f32.mrf.mxu0
      %527 = vmatprep.mubr.f32.mxu0 0.0
      %528 = vmatmul.mubr.f32.gmra.mxu0 %v406
      %v529 = vpop.f32.mrf.mxu0
      %v530 = vadd.f32 0.0, %v529
      %v531 = vpop.f32.mrf.mxu0
      %532 = vmatprep.mubr.f32.mxu0 0.0
      %533 = vmatmul.mubr.f32.gmra.mxu0 %v409
      %v534 = vpop.f32.mrf.mxu0
      %v535 = vadd.f32 0.0, %v534
      %v536 = vpop.f32.mrf.mxu0
      %537 = vmatprep.mubr.f32.mxu0 0.0
      %538 = vmatmul.mubr.f32.gmra.mxu0 %v412
      %v539 = vpop.f32.mrf.mxu0
      %v540 = vadd.f32 0.0, %v539
      %v541 = vpop.f32.mrf.mxu0
      %542 = vmatprep.mubr.f32.mxu0 0.0
      %543 = vmatmul.mubr.f32.gmra.mxu0 %v415
      %v544 = vpop.f32.mrf.mxu0
      %v545 = vadd.f32 0.0, %v544
      %v546 = vpop.f32.mrf.mxu0
      %547 = vmatprep.mubr.f32.mxu0 0.0
      %548 = vmatmul.mubr.f32.gmra.mxu0 %v418
      %v549 = vpop.f32.mrf.mxu0
      %v550 = vadd.f32 0.0, %v549
      %v551 = vpop.f32.mrf.mxu0
      %552 = vmatprep.mubr.f32.mxu0 0.0
      %553 = vmatmul.mubr.f32.gmra.mxu0 %v421
      %v554 = vpop.f32.mrf.mxu0
      %v555 = vadd.f32 0.0, %v554
      %v556 = vpop.f32.mrf.mxu0
      %557 = vmatprep.mubr.f32.mxu0 0.0
      %558 = vmatmul.mubr.f32.gmra.mxu0 %v424
      %v559 = vpop.f32.mrf.mxu0
      %v560 = vadd.f32 0.0, %v559
      %v561 = vpop.f32.mrf.mxu0
      %562 = vmatprep.mubr.f32.mxu0 0.0
      %563 = vmatmul.mubr.f32.gmra.mxu0 %v427
      %v564 = vpop.f32.mrf.mxu0
      %v565 = vadd.f32 0.0, %v564
      %v566 = vpop.f32.mrf.mxu0
      %567 = vmatprep.mubr.f32.mxu0 0.0
      %568 = vmatmul.mubr.f32.gmra.mxu0 %v430
      %v569 = vpop.f32.mrf.mxu0
      %v570 = vadd.f32 0.0, %v569
      %v571 = vpop.f32.mrf.mxu0
      %572 = vmatprep.mubr.f32.mxu0 0.0
      %573 = vmatmul.mubr.f32.gmra.mxu0 %v433
      %v574 = vpop.f32.mrf.mxu0
      %v575 = vadd.f32 0.0, %v574
      %v576 = vpop.f32.mrf.mxu0
      %577 = vmatprep.mubr.f32.mxu0 0.0
      %578 = vmatmul.mubr.f32.gmra.mxu0 %v436
      %v579 = vpop.f32.mrf.mxu0
      %v580 = vadd.f32 0.0, %v579
      %v581 = vpop.f32.mrf.mxu0
      %582 = vmatprep.mubr.f32.mxu0 0.0
      %583 = vmatmul.mubr.f32.gmra.mxu0 %v439
      %v584 = vpop.f32.mrf.mxu0
      %v585 = vadd.f32 0.0, %v584
      %v586 = vpop.f32.mrf.mxu0
      %587 = vmatprep.mubr.f32.mxu0 0.0
      %588 = vmatmul.mubr.f32.gmra.mxu0 %v442
      %v589 = vpop.f32.mrf.mxu0
      %v590 = vadd.f32 0.0, %v589
      %v591 = vpop.f32.mrf.mxu0
      %592 = vdwg.mxu0
      %vm593 = vcmask 228352
      %v595 = vsel %vm593, %v358, 0
      %v598 = vsel %vm593, %v359, 0
      %v601 = vsel %vm593, %v360, 0
      %v604 = vsel %vm593, %v361, 0
      %v607 = vsel %vm593, %v362, 0
      %v610 = vsel %vm593, %v363, 0
      %v613 = vsel %vm593, %v364, 0
      %v616 = vsel %vm593, %v365, 0
      %v619 = vsel %vm593, %v366, 0
      %v622 = vsel %vm593, %v367, 0
      %v625 = vsel %vm593, %v368, 0
      %v628 = vsel %vm593, %v369, 0
      %v631 = vsel %vm593, %v370, 0
      %v634 = vsel %vm593, %v371, 0
      %v637 = vsel %vm593, %v372, 0
      %v640 = vsel %vm593, %v373, 0
      %v643 = vsel %vm444, %v377, 0
      %645 = vmatprep.subr.mxu0 0.0
      %646 = vmatpush1.msra.mxu0 0.0
      %647 = vmatprep.subr.mxu0 0.0
      %648 = vmatpush1.msra.mxu0 0.0
      %649 = vmatprep.subr.mxu0 0.0
      %650 = vmatpush1.msra.mxu0 0.0
      %651 = vmatprep.subr.mxu0 0.0
      %652 = vmatpush1.msra.mxu0 0.0
      %653 = vmatprep.subr.mxu0 0.0
      %654 = vmatpush1.msra.mxu0 0.0
      %655 = vmatprep.subr.mxu0 0.0
      %656 = vmatpush1.msra.mxu0 0.0
      %657 = vmatprep.subr.mxu0 0.0
      %658 = vmatpush1.msra.mxu0 0.0
      %659 = vmatprep.subr.mxu0 0.0
      %660 = vmatpush1.msra.mxu0 0.0
      %661 = vmatprep.subr.mxu0 0.0
      %662 = vmatpush1.msra.mxu0 0.0
      %663 = vmatprep.subr.mxu0 0.0
      %664 = vmatpush1.msra.mxu0 0.0
      %665 = vmatprep.subr.mxu0 0.0
      %666 = vmatpush1.msra.mxu0 0.0
      %667 = vmatprep.subr.mxu0 0.0
      %668 = vmatpush1.msra.mxu0 0.0
      %669 = vmatprep.subr.mxu0 0.0
      %670 = vmatpush1.msra.mxu0 %v643
      %671 = vmatprep.subr.mxu0 0.0
      %672 = vmatpush1.msra.mxu0 %v376
      %673 = vmatprep.subr.mxu0 0.0
      %674 = vmatpush1.msra.mxu0 %v375
      %675 = vmatprep.subr.mxu0 0.0
      %676 = vmatpush1.msra.mxu0 %v374
      %677 = vmatprep.subr.mxu0 0.0
      %678 = vmatpush2.msra.mxu0 0.0
      %679 = vmatprep.subr.mxu0 0.0
      %680 = vmatpush2.msra.mxu0 0.0
      %681 = vmatprep.subr.mxu0 0.0
      %682 = vmatpush2.msra.mxu0 0.0
      %683 = vmatprep.subr.mxu0 0.0
      %684 = vmatpush2.msra.mxu0 0.0
      %685 = vmatprep.subr.mxu0 0.0
      %686 = vmatpush2.msra.mxu0 0.0
      %687 = vmatprep.subr.mxu0 0.0
      %688 = vmatpush2.msra.mxu0 0.0
      %689 = vmatprep.subr.mxu0 0.0
      %690 = vmatpush2.msra.mxu0 0.0
      %691 = vmatprep.subr.mxu0 0.0
      %692 = vmatpush2.msra.mxu0 0.0
      %693 = vmatprep.subr.mxu0 0.0
      %694 = vmatpush2.msra.mxu0 0.0
      %695 = vmatprep.subr.mxu0 0.0
      %696 = vmatpush2.msra.mxu0 0.0
      %697 = vmatprep.subr.mxu0 0.0
      %698 = vmatpush2.msra.mxu0 0.0
      %699 = vmatprep.subr.mxu0 0.0
      %700 = vmatpush2.msra.mxu0 0.0
      %701 = vmatprep.subr.mxu0 0.0
      %702 = vmatpush2.msra.mxu0 0.0
      %703 = vmatprep.subr.mxu0 0.0
      %704 = vmatpush2.msra.mxu0 0.0
      %705 = vmatprep.subr.mxu0 0.0
      %706 = vmatpush2.msra.mxu0 0.0
      %707 = vmatprep.subr.mxu0 0.0
      %708 = vmatpush2.msra.mxu0 0.0
      %709 = vmatprep.mubr.f32.mxu0 0.0
      %710 = vmatmul.mubr.f32.gmra.mxu0 %v595
      %v711 = vpop.f32.mrf.mxu0
      %v712 = vadd.f32 %v515, %v711
      %v713 = vpop.f32.mrf.mxu0
      %714 = vmatprep.mubr.f32.mxu0 0.0
      %715 = vmatmul.mubr.f32.gmra.mxu0 %v598
      %v716 = vpop.f32.mrf.mxu0
      %v717 = vadd.f32 %v520, %v716
      %v718 = vpop.f32.mrf.mxu0
      %719 = vmatprep.mubr.f32.mxu0 0.0
      %720 = vmatmul.mubr.f32.gmra.mxu0 %v601
      %v721 = vpop.f32.mrf.mxu0
      %v722 = vadd.f32 %v525, %v721
      %v723 = vpop.f32.mrf.mxu0
      %724 = vmatprep.mubr.f32.mxu0 0.0
      %725 = vmatmul.mubr.f32.gmra.mxu0 %v604
      %v726 = vpop.f32.mrf.mxu0
      %v727 = vadd.f32 %v530, %v726
      %v728 = vpop.f32.mrf.mxu0
      %729 = vmatprep.mubr.f32.mxu0 0.0
      %730 = vmatmul.mubr.f32.gmra.mxu0 %v607
      %v731 = vpop.f32.mrf.mxu0
      %v732 = vadd.f32 %v535, %v731
      %v733 = vpop.f32.mrf.mxu0
      %734 = vmatprep.mubr.f32.mxu0 0.0
      %735 = vmatmul.mubr.f32.gmra.mxu0 %v610
      %v736 = vpop.f32.mrf.mxu0
      %v737 = vadd.f32 %v540, %v736
      %v738 = vpop.f32.mrf.mxu0
      %739 = vmatprep.mubr.f32.mxu0 0.0
      %740 = vmatmul.mubr.f32.gmra.mxu0 %v613
      %v741 = vpop.f32.mrf.mxu0
      %v742 = vadd.f32 %v545, %v741
      %v743 = vpop.f32.mrf.mxu0
      %744 = vmatprep.mubr.f32.mxu0 0.0
      %745 = vmatmul.mubr.f32.gmra.mxu0 %v616
      %v746 = vpop.f32.mrf.mxu0
      %v747 = vadd.f32 %v550, %v746
      %v748 = vpop.f32.mrf.mxu0
      %749 = vmatprep.mubr.f32.mxu0 0.0
      %750 = vmatmul.mubr.f32.gmra.mxu0 %v619
      %v751 = vpop.f32.mrf.mxu0
      %v752 = vadd.f32 %v555, %v751
      %v753 = vpop.f32.mrf.mxu0
      %754 = vmatprep.mubr.f32.mxu0 0.0
      %755 = vmatmul.mubr.f32.gmra.mxu0 %v622
      %v756 = vpop.f32.mrf.mxu0
      %v757 = vadd.f32 %v560, %v756
      %v758 = vpop.f32.mrf.mxu0
      %759 = vmatprep.mubr.f32.mxu0 0.0
      %760 = vmatmul.mubr.f32.gmra.mxu0 %v625
      %v761 = vpop.f32.mrf.mxu0
      %v762 = vadd.f32 %v565, %v761
      %v763 = vpop.f32.mrf.mxu0
      %764 = vmatprep.mubr.f32.mxu0 0.0
      %765 = vmatmul.mubr.f32.gmra.mxu0 %v628
      %v766 = vpop.f32.mrf.mxu0
      %v767 = vadd.f32 %v570, %v766
      %v768 = vpop.f32.mrf.mxu0
      %769 = vmatprep.mubr.f32.mxu0 0.0
      %770 = vmatmul.mubr.f32.gmra.mxu0 %v631
      %v771 = vpop.f32.mrf.mxu0
      %v772 = vadd.f32 %v575, %v771
      %v773 = vpop.f32.mrf.mxu0
      %774 = vmatprep.mubr.f32.mxu0 0.0
      %775 = vmatmul.mubr.f32.gmra.mxu0 %v634
      %v776 = vpop.f32.mrf.mxu0
      %v777 = vadd.f32 %v580, %v776
      %v778 = vpop.f32.mrf.mxu0
      %779 = vmatprep.mubr.f32.mxu0 0.0
      %780 = vmatmul.mubr.f32.gmra.mxu0 %v637
      %v781 = vpop.f32.mrf.mxu0
      %v782 = vadd.f32 %v585, %v781
      %v783 = vpop.f32.mrf.mxu0
      %784 = vmatprep.mubr.f32.mxu0 0.0
      %785 = vmatmul.mubr.f32.gmra.mxu0 %v640
      %v786 = vpop.f32.mrf.mxu0
      %v787 = vadd.f32 %v590, %v786
      %v788 = vpop.f32.mrf.mxu0
      %789 = vdwg.mxu0
      %v790 = vld [vmem:[%s4] sm:$0x1]
      %v792 = vlaneseq
      %v793 = vshrl.u32 %v792, 7
      %v794 = vsub.s32 0, %v793
      %v795 = vrot.slane %v790, %v794
      %v797 = vadd.f32 %v712, %v795
      %v798 = vadd.f32 %v717, %v795
      %v799 = vadd.f32 %v722, %v795
      %v800 = vadd.f32 %v727, %v795
      %v801 = vadd.f32 %v732, %v795
      %v802 = vadd.f32 %v737, %v795
      %v803 = vadd.f32 %v742, %v795
      %v804 = vadd.f32 %v747, %v795
      %v805 = vadd.f32 %v752, %v795
      %v806 = vadd.f32 %v757, %v795
      %v807 = vadd.f32 %v762, %v795
      %v808 = vadd.f32 %v767, %v795
      %v809 = vadd.f32 %v772, %v795
      %v810 = vadd.f32 %v777, %v795
      %v811 = vadd.f32 %v782, %v795
      %v812 = vadd.f32 %v787, %v795
      %vm813 = vcmp.gt.f32.partialorder %v797, 0.0
      %vm814 = vcmp.gt.f32.partialorder %v798, 0.0
      %vm815 = vcmp.gt.f32.partialorder %v799, 0.0
      %vm816 = vcmp.gt.f32.partialorder %v800, 0.0
      %vm817 = vcmp.gt.f32.partialorder %v801, 0.0
      %vm818 = vcmp.gt.f32.partialorder %v802, 0.0
      %vm819 = vcmp.gt.f32.partialorder %v803, 0.0
      %vm820 = vcmp.gt.f32.partialorder %v804, 0.0
      %vm821 = vcmp.gt.f32.partialorder %v805, 0.0
      %vm822 = vcmp.gt.f32.partialorder %v806, 0.0
      %vm823 = vcmp.gt.f32.partialorder %v807, 0.0
      %vm824 = vcmp.gt.f32.partialorder %v808, 0.0
      %vm825 = vcmp.gt.f32.partialorder %v809, 0.0
      %vm826 = vcmp.gt.f32.partialorder %v810, 0.0
      %vm827 = vcmp.gt.f32.partialorder %v811, 0.0
      %vm828 = vcmp.gt.f32.partialorder %v812, 0.0
      %v829 = vmul.f32 %v797, 0.01
      %v830 = vmul.f32 %v798, 0.01
      %v831 = vmul.f32 %v799, 0.01
      %v832 = vmul.f32 %v800, 0.01
      %v833 = vmul.f32 %v801, 0.01
      %v834 = vmul.f32 %v802, 0.01
      %v835 = vmul.f32 %v803, 0.01
      %v836 = vmul.f32 %v804, 0.01
      %v837 = vmul.f32 %v805, 0.01
      %v838 = vmul.f32 %v806, 0.01
      %v839 = vmul.f32 %v807, 0.01
      %v840 = vmul.f32 %v808, 0.01
      %v841 = vmul.f32 %v809, 0.01
      %v842 = vmul.f32 %v810, 0.01
      %v843 = vmul.f32 %v811, 0.01
      %v844 = vmul.f32 %v812, 0.01
      %v845 = vsel %vm813, %v797, %v829
      %v846 = vsel %vm814, %v798, %v830
      %v847 = vsel %vm815, %v799, %v831
      %v848 = vsel %vm816, %v800, %v832
      %v849 = vsel %vm817, %v801, %v833
      %v850 = vsel %vm818, %v802, %v834
      %v851 = vsel %vm819, %v803, %v835
      %v852 = vsel %vm820, %v804, %v836
      %v853 = vsel %vm821, %v805, %v837
      %v854 = vsel %vm822, %v806, %v838
      %v855 = vsel %vm823, %v807, %v839
      %v856 = vsel %vm824, %v808, %v840
      %v857 = vsel %vm825, %v809, %v841
      %v858 = vsel %vm826, %v810, %v842
      %v859 = vsel %vm827, %v811, %v843
      %v860 = vsel %vm828, %v812, %v844
      %v861 = vld [vmem:[%s5] sm:$0xff]
      %v862 = vld [vmem:[%s5 + $0x8] sm:$0xff]
      %v863 = vld [vmem:[%s5 + $0x10] sm:$0xff]
      %v864 = vld [vmem:[%s5 + $0x18] sm:$0xff]
      %v865 = vld [vmem:[%s5 + $0x20] sm:$0xff]
      %v866 = vld [vmem:[%s5 + $0x28] sm:$0xff]
      %v867 = vld [vmem:[%s5 + $0x30] sm:$0xff]
      %v868 = vld [vmem:[%s5 + $0x38] sm:$0xff]
      %v869 = vld [vmem:[%s5 + $0x40] sm:$0xff]
      %v870 = vld [vmem:[%s5 + $0x48] sm:$0xff]
      %v871 = vld [vmem:[%s5 + $0x50] sm:$0xff]
      %v872 = vld [vmem:[%s5 + $0x58] sm:$0xff]
      %v873 = vld [vmem:[%s5 + $0x60] sm:$0xff]
      %v874 = vld [vmem:[%s5 + $0x68] sm:$0xff]
      %v875 = vld [vmem:[%s5 + $0x70] sm:$0xff]
      %v876 = vld [vmem:[%s5 + $0x78] sm:$0xff]
      %v877 = vld [vmem:[%s6] sm:$0x1]
      %v879 = vlaneseq
      %v880 = vshrl.u32 %v879, 7
      %v881 = vsub.s32 0, %v880
      %v882 = vrot.slane %v877, %v881
      %884 = vmatprep.subr.mxu0 0.0
      %885 = vmatpush1.msra.mxu0 %v876
      %886 = vmatprep.subr.mxu0 0.0
      %887 = vmatpush1.msra.mxu0 %v875
      %888 = vmatprep.subr.mxu0 0.0
      %889 = vmatpush1.msra.mxu0 %v874
      %890 = vmatprep.subr.mxu0 0.0
      %891 = vmatpush1.msra.mxu0 %v873
      %892 = vmatprep.subr.mxu0 0.0
      %893 = vmatpush1.msra.mxu0 %v872
      %894 = vmatprep.subr.mxu0 0.0
      %895 = vmatpush1.msra.mxu0 %v871
      %896 = vmatprep.subr.mxu0 0.0
      %897 = vmatpush1.msra.mxu0 %v870
      %898 = vmatprep.subr.mxu0 0.0
      %899 = vmatpush1.msra.mxu0 %v869
      %900 = vmatprep.subr.mxu0 0.0
      %901 = vmatpush1.msra.mxu0 %v868
      %902 = vmatprep.subr.mxu0 0.0
      %903 = vmatpush1.msra.mxu0 %v867
      %904 = vmatprep.subr.mxu0 0.0
      %905 = vmatpush1.msra.mxu0 %v866
      %906 = vmatprep.subr.mxu0 0.0
      %907 = vmatpush1.msra.mxu0 %v865
      %908 = vmatprep.subr.mxu0 0.0
      %909 = vmatpush1.msra.mxu0 %v864
      %910 = vmatprep.subr.mxu0 0.0
      %911 = vmatpush1.msra.mxu0 %v863
      %912 = vmatprep.subr.mxu0 0.0
      %913 = vmatpush1.msra.mxu0 %v862
      %914 = vmatprep.subr.mxu0 0.0
      %915 = vmatpush1.msra.mxu0 %v861
      %916 = vmatprep.subr.mxu0 0.0
      %917 = vmatpush2.msra.mxu0 0.0
      %918 = vmatprep.subr.mxu0 0.0
      %919 = vmatpush2.msra.mxu0 0.0
      %920 = vmatprep.subr.mxu0 0.0
      %921 = vmatpush2.msra.mxu0 0.0
      %922 = vmatprep.subr.mxu0 0.0
      %923 = vmatpush2.msra.mxu0 0.0
      %924 = vmatprep.subr.mxu0 0.0
      %925 = vmatpush2.msra.mxu0 0.0
      %926 = vmatprep.subr.mxu0 0.0
      %927 = vmatpush2.msra.mxu0 0.0
      %928 = vmatprep.subr.mxu0 0.0
      %929 = vmatpush2.msra.mxu0 0.0
      %930 = vmatprep.subr.mxu0 0.0
      %931 = vmatpush2.msra.mxu0 0.0
      %932 = vmatprep.subr.mxu0 0.0
      %933 = vmatpush2.msra.mxu0 0.0
      %934 = vmatprep.subr.mxu0 0.0
      %935 = vmatpush2.msra.mxu0 0.0
      %936 = vmatprep.subr.mxu0 0.0
      %937 = vmatpush2.msra.mxu0 0.0
      %938 = vmatprep.subr.mxu0 0.0
      %939 = vmatpush2.msra.mxu0 0.0
      %940 = vmatprep.subr.mxu0 0.0
      %941 = vmatpush2.msra.mxu0 0.0
      %942 = vmatprep.subr.mxu0 0.0
      %943 = vmatpush2.msra.mxu0 0.0
      %944 = vmatprep.subr.mxu0 0.0
      %945 = vmatpush2.msra.mxu0 0.0
      %946 = vmatprep.subr.mxu0 0.0
      %947 = vmatpush2.msra.mxu0 0.0
      %948 = vmatprep.mubr.f32.mxu0 0.0
      %949 = vmatmul.mubr.f32.gmra.mxu0 %v845
      %v950 = vpop.f32.mrf.mxu0
      %v951 = vadd.f32 %v882, %v950
      %v952 = vpop.f32.mrf.mxu0
      %953 = vmatprep.mubr.f32.mxu0 0.0
      %954 = vmatmul.mubr.f32.gmra.mxu0 %v846
      %v955 = vpop.f32.mrf.mxu0
      %v956 = vadd.f32 %v882, %v955
      %v957 = vpop.f32.mrf.mxu0
      %958 = vmatprep.mubr.f32.mxu0 0.0
      %959 = vmatmul.mubr.f32.gmra.mxu0 %v847
      %v960 = vpop.f32.mrf.mxu0
      %v961 = vadd.f32 %v882, %v960
      %v962 = vpop.f32.mrf.mxu0
      %963 = vmatprep.mubr.f32.mxu0 0.0
      %964 = vmatmul.mubr.f32.gmra.mxu0 %v848
      %v965 = vpop.f32.mrf.mxu0
      %v966 = vadd.f32 %v882, %v965
      %v967 = vpop.f32.mrf.mxu0
      %968 = vmatprep.mubr.f32.mxu0 0.0
      %969 = vmatmul.mubr.f32.gmra.mxu0 %v849
      %v970 = vpop.f32.mrf.mxu0
      %v971 = vadd.f32 %v882, %v970
      %v972 = vpop.f32.mrf.mxu0
      %973 = vmatprep.mubr.f32.mxu0 0.0
      %974 = vmatmul.mubr.f32.gmra.mxu0 %v850
      %v975 = vpop.f32.mrf.mxu0
      %v976 = vadd.f32 %v882, %v975
      %v977 = vpop.f32.mrf.mxu0
      %978 = vmatprep.mubr.f32.mxu0 0.0
      %979 = vmatmul.mubr.f32.gmra.mxu0 %v851
      %v980 = vpop.f32.mrf.mxu0
      %v981 = vadd.f32 %v882, %v980
      %v982 = vpop.f32.mrf.mxu0
      %983 = vmatprep.mubr.f32.mxu0 0.0
      %984 = vmatmul.mubr.f32.gmra.mxu0 %v852
      %v985 = vpop.f32.mrf.mxu0
      %v986 = vadd.f32 %v882, %v985
      %v987 = vpop.f32.mrf.mxu0
      %988 = vmatprep.mubr.f32.mxu0 0.0
      %989 = vmatmul.mubr.f32.gmra.mxu0 %v853
      %v990 = vpop.f32.mrf.mxu0
      %v991 = vadd.f32 %v882, %v990
      %v992 = vpop.f32.mrf.mxu0
      %993 = vmatprep.mubr.f32.mxu0 0.0
      %994 = vmatmul.mubr.f32.gmra.mxu0 %v854
      %v995 = vpop.f32.mrf.mxu0
      %v996 = vadd.f32 %v882, %v995
      %v997 = vpop.f32.mrf.mxu0
      %998 = vmatprep.mubr.f32.mxu0 0.0
      %999 = vmatmul.mubr.f32.gmra.mxu0 %v855
      %v1000 = vpop.f32.mrf.mxu0
      %v1001 = vadd.f32 %v882, %v1000
      %v1002 = vpop.f32.mrf.mxu0
      %1003 = vmatprep.mubr.f32.mxu0 0.0
      %1004 = vmatmul.mubr.f32.gmra.mxu0 %v856
      %v1005 = vpop.f32.mrf.mxu0
      %v1006 = vadd.f32 %v882, %v1005
      %v1007 = vpop.f32.mrf.mxu0
      %1008 = vmatprep.mubr.f32.mxu0 0.0
      %1009 = vmatmul.mubr.f32.gmra.mxu0 %v857
      %v1010 = vpop.f32.mrf.mxu0
      %v1011 = vadd.f32 %v882, %v1010
      %v1012 = vpop.f32.mrf.mxu0
      %1013 = vmatprep.mubr.f32.mxu0 0.0
      %1014 = vmatmul.mubr.f32.gmra.mxu0 %v858
      %v1015 = vpop.f32.mrf.mxu0
      %v1016 = vadd.f32 %v882, %v1015
      %v1017 = vpop.f32.mrf.mxu0
      %1018 = vmatprep.mubr.f32.mxu0 0.0
      %1019 = vmatmul.mubr.f32.gmra.mxu0 %v859
      %v1020 = vpop.f32.mrf.mxu0
      %v1021 = vadd.f32 %v882, %v1020
      %v1022 = vpop.f32.mrf.mxu0
      %1023 = vmatprep.mubr.f32.mxu0 0.0
      %1024 = vmatmul.mubr.f32.gmra.mxu0 %v860
      %v1025 = vpop.f32.mrf.mxu0
      %v1026 = vadd.f32 %v882, %v1025
      %v1027 = vpop.f32.mrf.mxu0
      %1028 = vdwg.mxu0
      %vm1029 = vcmp.gt.f32.partialorder %v951, 0.0
      %vm1030 = vcmp.gt.f32.partialorder %v956, 0.0
      %vm1031 = vcmp.gt.f32.partialorder %v961, 0.0
      %vm1032 = vcmp.gt.f32.partialorder %v966, 0.0
      %vm1033 = vcmp.gt.f32.partialorder %v971, 0.0
      %vm1034 = vcmp.gt.f32.partialorder %v976, 0.0
      %vm1035 = vcmp.gt.f32.partialorder %v981, 0.0
      %vm1036 = vcmp.gt.f32.partialorder %v986, 0.0
      %vm1037 = vcmp.gt.f32.partialorder %v991, 0.0
      %vm1038 = vcmp.gt.f32.partialorder %v996, 0.0
      %vm1039 = vcmp.gt.f32.partialorder %v1001, 0.0
      %vm1040 = vcmp.gt.f32.partialorder %v1006, 0.0
      %vm1041 = vcmp.gt.f32.partialorder %v1011, 0.0
      %vm1042 = vcmp.gt.f32.partialorder %v1016, 0.0
      %vm1043 = vcmp.gt.f32.partialorder %v1021, 0.0
      %vm1044 = vcmp.gt.f32.partialorder %v1026, 0.0
      %v1045 = vmul.f32 %v951, 0.01
      %v1046 = vmul.f32 %v956, 0.01
      %v1047 = vmul.f32 %v961, 0.01
      %v1048 = vmul.f32 %v966, 0.01
      %v1049 = vmul.f32 %v971, 0.01
      %v1050 = vmul.f32 %v976, 0.01
      %v1051 = vmul.f32 %v981, 0.01
      %v1052 = vmul.f32 %v986, 0.01
      %v1053 = vmul.f32 %v991, 0.01
      %v1054 = vmul.f32 %v996, 0.01
      %v1055 = vmul.f32 %v1001, 0.01
      %v1056 = vmul.f32 %v1006, 0.01
      %v1057 = vmul.f32 %v1011, 0.01
      %v1058 = vmul.f32 %v1016, 0.01
      %v1059 = vmul.f32 %v1021, 0.01
      %v1060 = vmul.f32 %v1026, 0.01
      %v1061 = vsel %vm1029, %v951, %v1045
      %v1062 = vsel %vm1030, %v956, %v1046
      %v1063 = vsel %vm1031, %v961, %v1047
      %v1064 = vsel %vm1032, %v966, %v1048
      %v1065 = vsel %vm1033, %v971, %v1049
      %v1066 = vsel %vm1034, %v976, %v1050
      %v1067 = vsel %vm1035, %v981, %v1051
      %v1068 = vsel %vm1036, %v986, %v1052
      %v1069 = vsel %vm1037, %v991, %v1053
      %v1070 = vsel %vm1038, %v996, %v1054
      %v1071 = vsel %vm1039, %v1001, %v1055
      %v1072 = vsel %vm1040, %v1006, %v1056
      %v1073 = vsel %vm1041, %v1011, %v1057
      %v1074 = vsel %vm1042, %v1016, %v1058
      %v1075 = vsel %vm1043, %v1021, %v1059
      %v1076 = vsel %vm1044, %v1026, %v1060
      %v1077 = vld [vmem:[%s7] sm:$0xff]
      %v1078 = vld [vmem:[%s7 + $0x8] sm:$0xff]
      %v1079 = vld [vmem:[%s7 + $0x10] sm:$0xff]
      %v1080 = vld [vmem:[%s7 + $0x18] sm:$0xff]
      %v1081 = vld [vmem:[%s7 + $0x20] sm:$0xff]
      %v1082 = vld [vmem:[%s7 + $0x28] sm:$0xff]
      %v1083 = vld [vmem:[%s7 + $0x30] sm:$0xff]
      %v1084 = vld [vmem:[%s7 + $0x38] sm:$0xff]
      %v1085 = vld [vmem:[%s7 + $0x40] sm:$0xff]
      %v1086 = vld [vmem:[%s7 + $0x48] sm:$0xff]
      %v1087 = vld [vmem:[%s7 + $0x50] sm:$0xff]
      %v1088 = vld [vmem:[%s7 + $0x58] sm:$0xff]
      %v1089 = vld [vmem:[%s7 + $0x60] sm:$0xff]
      %v1090 = vld [vmem:[%s7 + $0x68] sm:$0xff]
      %v1091 = vld [vmem:[%s7 + $0x70] sm:$0xff]
      %v1092 = vld [vmem:[%s7 + $0x78] sm:$0xff]
      %v1093 = vld [vmem:[%s8] sm:$0x1]
      %v1095 = vlaneseq
      %v1096 = vshrl.u32 %v1095, 7
      %v1097 = vsub.s32 0, %v1096
      %v1098 = vrot.slane %v1093, %v1097
      %1100 = vmatprep.subr.mxu0 0.0
      %1101 = vmatpush1.msra.mxu0 %v1092
      %1102 = vmatprep.subr.mxu0 0.0
      %1103 = vmatpush1.msra.mxu0 %v1091
      %1104 = vmatprep.subr.mxu0 0.0
      %1105 = vmatpush1.msra.mxu0 %v1090
      %1106 = vmatprep.subr.mxu0 0.0
      %1107 = vmatpush1.msra.mxu0 %v1089
      %1108 = vmatprep.subr.mxu0 0.0
      %1109 = vmatpush1.msra.mxu0 %v1088
      %1110 = vmatprep.subr.mxu0 0.0
      %1111 = vmatpush1.msra.mxu0 %v1087
      %1112 = vmatprep.subr.mxu0 0.0
      %1113 = vmatpush1.msra.mxu0 %v1086
      %1114 = vmatprep.subr.mxu0 0.0
      %1115 = vmatpush1.msra.mxu0 %v1085
      %1116 = vmatprep.subr.mxu0 0.0
      %1117 = vmatpush1.msra.mxu0 %v1084
      %1118 = vmatprep.subr.mxu0 0.0
      %1119 = vmatpush1.msra.mxu0 %v1083
      %1120 = vmatprep.subr.mxu0 0.0
      %1121 = vmatpush1.msra.mxu0 %v1082
      %1122 = vmatprep.subr.mxu0 0.0
      %1123 = vmatpush1.msra.mxu0 %v1081
      %1124 = vmatprep.subr.mxu0 0.0
      %1125 = vmatpush1.msra.mxu0 %v1080
      %1126 = vmatprep.subr.mxu0 0.0
      %1127 = vmatpush1.msra.mxu0 %v1079
      %1128 = vmatprep.subr.mxu0 0.0
      %1129 = vmatpush1.msra.mxu0 %v1078
      %1130 = vmatprep.subr.mxu0 0.0
      %1131 = vmatpush1.msra.mxu0 %v1077
      %1132 = vmatprep.subr.mxu0 0.0
      %1133 = vmatpush2.msra.mxu0 0.0
      %1134 = vmatprep.subr.mxu0 0.0
      %1135 = vmatpush2.msra.mxu0 0.0
      %1136 = vmatprep.subr.mxu0 0.0
      %1137 = vmatpush2.msra.mxu0 0.0
      %1138 = vmatprep.subr.mxu0 0.0
      %1139 = vmatpush2.msra.mxu0 0.0
      %1140 = vmatprep.subr.mxu0 0.0
      %1141 = vmatpush2.msra.mxu0 0.0
      %1142 = vmatprep.subr.mxu0 0.0
      %1143 = vmatpush2.msra.mxu0 0.0
      %1144 = vmatprep.subr.mxu0 0.0
      %1145 = vmatpush2.msra.mxu0 0.0
      %1146 = vmatprep.subr.mxu0 0.0
      %1147 = vmatpush2.msra.mxu0 0.0
      %1148 = vmatprep.subr.mxu0 0.0
      %1149 = vmatpush2.msra.mxu0 0.0
      %1150 = vmatprep.subr.mxu0 0.0
      %1151 = vmatpush2.msra.mxu0 0.0
      %1152 = vmatprep.subr.mxu0 0.0
      %1153 = vmatpush2.msra.mxu0 0.0
      %1154 = vmatprep.subr.mxu0 0.0
      %1155 = vmatpush2.msra.mxu0 0.0
      %1156 = vmatprep.subr.mxu0 0.0
      %1157 = vmatpush2.msra.mxu0 0.0
      %1158 = vmatprep.subr.mxu0 0.0
      %1159 = vmatpush2.msra.mxu0 0.0
      %1160 = vmatprep.subr.mxu0 0.0
      %1161 = vmatpush2.msra.mxu0 0.0
      %1162 = vmatprep.subr.mxu0 0.0
      %1163 = vmatpush2.msra.mxu0 0.0
      %1164 = vmatprep.mubr.f32.mxu0 0.0
      %1165 = vmatmul.mubr.f32.gmra.mxu0 %v1061
      %v1166 = vpop.f32.mrf.mxu0
      %v1167 = vadd.f32 %v1098, %v1166
      %v1168 = vpop.f32.mrf.mxu0
      %1169 = vmatprep.mubr.f32.mxu0 0.0
      %1170 = vmatmul.mubr.f32.gmra.mxu0 %v1062
      %v1171 = vpop.f32.mrf.mxu0
      %v1172 = vadd.f32 %v1098, %v1171
      %v1173 = vpop.f32.mrf.mxu0
      %1174 = vmatprep.mubr.f32.mxu0 0.0
      %1175 = vmatmul.mubr.f32.gmra.mxu0 %v1063
      %v1176 = vpop.f32.mrf.mxu0
      %v1177 = vadd.f32 %v1098, %v1176
      %v1178 = vpop.f32.mrf.mxu0
      %1179 = vmatprep.mubr.f32.mxu0 0.0
      %1180 = vmatmul.mubr.f32.gmra.mxu0 %v1064
      %v1181 = vpop.f32.mrf.mxu0
      %v1182 = vadd.f32 %v1098, %v1181
      %v1183 = vpop.f32.mrf.mxu0
      %1184 = vmatprep.mubr.f32.mxu0 0.0
      %1185 = vmatmul.mubr.f32.gmra.mxu0 %v1065
      %v1186 = vpop.f32.mrf.mxu0
      %v1187 = vadd.f32 %v1098, %v1186
      %v1188 = vpop.f32.mrf.mxu0
      %1189 = vmatprep.mubr.f32.mxu0 0.0
      %1190 = vmatmul.mubr.f32.gmra.mxu0 %v1066
      %v1191 = vpop.f32.mrf.mxu0
      %v1192 = vadd.f32 %v1098, %v1191
      %v1193 = vpop.f32.mrf.mxu0
      %1194 = vmatprep.mubr.f32.mxu0 0.0
      %1195 = vmatmul.mubr.f32.gmra.mxu0 %v1067
      %v1196 = vpop.f32.mrf.mxu0
      %v1197 = vadd.f32 %v1098, %v1196
      %v1198 = vpop.f32.mrf.mxu0
      %1199 = vmatprep.mubr.f32.mxu0 0.0
      %1200 = vmatmul.mubr.f32.gmra.mxu0 %v1068
      %v1201 = vpop.f32.mrf.mxu0
      %v1202 = vadd.f32 %v1098, %v1201
      %v1203 = vpop.f32.mrf.mxu0
      %1204 = vmatprep.mubr.f32.mxu0 0.0
      %1205 = vmatmul.mubr.f32.gmra.mxu0 %v1069
      %v1206 = vpop.f32.mrf.mxu0
      %v1207 = vadd.f32 %v1098, %v1206
      %v1208 = vpop.f32.mrf.mxu0
      %1209 = vmatprep.mubr.f32.mxu0 0.0
      %1210 = vmatmul.mubr.f32.gmra.mxu0 %v1070
      %v1211 = vpop.f32.mrf.mxu0
      %v1212 = vadd.f32 %v1098, %v1211
      %v1213 = vpop.f32.mrf.mxu0
      %1214 = vmatprep.mubr.f32.mxu0 0.0
      %1215 = vmatmul.mubr.f32.gmra.mxu0 %v1071
      %v1216 = vpop.f32.mrf.mxu0
      %v1217 = vadd.f32 %v1098, %v1216
      %v1218 = vpop.f32.mrf.mxu0
      %1219 = vmatprep.mubr.f32.mxu0 0.0
      %1220 = vmatmul.mubr.f32.gmra.mxu0 %v1072
      %v1221 = vpop.f32.mrf.mxu0
      %v1222 = vadd.f32 %v1098, %v1221
      %v1223 = vpop.f32.mrf.mxu0
      %1224 = vmatprep.mubr.f32.mxu0 0.0
      %1225 = vmatmul.mubr.f32.gmra.mxu0 %v1073
      %v1226 = vpop.f32.mrf.mxu0
      %v1227 = vadd.f32 %v1098, %v1226
      %v1228 = vpop.f32.mrf.mxu0
      %1229 = vmatprep.mubr.f32.mxu0 0.0
      %1230 = vmatmul.mubr.f32.gmra.mxu0 %v1074
      %v1231 = vpop.f32.mrf.mxu0
      %v1232 = vadd.f32 %v1098, %v1231
      %v1233 = vpop.f32.mrf.mxu0
      %1234 = vmatprep.mubr.f32.mxu0 0.0
      %1235 = vmatmul.mubr.f32.gmra.mxu0 %v1075
      %v1236 = vpop.f32.mrf.mxu0
      %v1237 = vadd.f32 %v1098, %v1236
      %v1238 = vpop.f32.mrf.mxu0
      %1239 = vmatprep.mubr.f32.mxu0 0.0
      %1240 = vmatmul.mubr.f32.gmra.mxu0 %v1076
      %v1241 = vpop.f32.mrf.mxu0
      %v1242 = vadd.f32 %v1098, %v1241
      %v1243 = vpop.f32.mrf.mxu0
      %1244 = vdwg.mxu0
      %1245 = vst [vmem:[%s356] sm:$0xff] %v1167
      %1246 = vst [vmem:[%s356 + $0x8] sm:$0xff] %v1172
      %1247 = vst [vmem:[%s356 + $0x10] sm:$0xff] %v1177
      %1248 = vst [vmem:[%s356 + $0x18] sm:$0xff] %v1182
      %1249 = vst [vmem:[%s356 + $0x20] sm:$0xff] %v1187
      %1250 = vst [vmem:[%s356 + $0x28] sm:$0xff] %v1192
      %1251 = vst [vmem:[%s356 + $0x30] sm:$0xff] %v1197
      %1252 = vst [vmem:[%s356 + $0x38] sm:$0xff] %v1202
      %1253 = vst [vmem:[%s356 + $0x40] sm:$0xff] %v1207
      %1254 = vst [vmem:[%s356 + $0x48] sm:$0xff] %v1212
      %1255 = vst [vmem:[%s356 + $0x50] sm:$0xff] %v1217
      %1256 = vst [vmem:[%s356 + $0x58] sm:$0xff] %v1222
      %1257 = vst [vmem:[%s356 + $0x60] sm:$0xff] %v1227
      %1258 = vst [vmem:[%s356 + $0x68] sm:$0xff] %v1232
      %1259 = vst [vmem:[%s356 + $0x70] sm:$0xff] %v1237
      %1260 = vst [vmem:[%s356 + $0x78] sm:$0xff] %v1242
      %s1261 = smul.u32 16, %s20
      %p1262 = scmp.lt.s32.totalorder %s1261, 31
      %s1263 = scalar_select %p1262, %s1261, 31
      %s1264 = smul.addr %s1263, 8
      %s1265 = scalar_lea.vmem %s9, %s1264
      // Predicated region
      $region57: #{dqn_forward.1} parent=55 // pred_check
        %p1266 = pneg %p237
      $region58: #{dqn_forward.1} parent=55 // pred_check_branch
        %1268 = sbr.rel (%p1266) target = $region60
      $region59: #{dqn_forward.1} parent=55 // pred_region
        %s1269 = smul.u32 16, %s20
      $region60: #{dqn_forward.1} parent=55 // pred_fallthru
        _
    $region56: #{dqn_forward.1} parent=5 // pred_fallthru
      _
    %p1270 = scmp.le.s32.totalorder 2, %s15
    // Predicated region
    $region61: #{dqn_forward.1} parent=5 // pred_check
      %p1271 = pneg %p1270
    $region62: #{dqn_forward.1} parent=5 // pred_check_branch
      %1273 = sbr.rel (%p1271) target = $region64
    $region63: #{dqn_forward.1} parent=5 // pred_region
      %s1274 = ssub.s32 %s15, 2
      // Predicated region
      $region65: #{dqn_forward.1} parent=63 // pred_check
        %p1275 = pneg %p243
      $region66: #{dqn_forward.1} parent=63 // pred_check_branch
        %1277 = sbr.rel (%p1275) target = $region68
      $region67: #{dqn_forward.1} parent=63 // pred_region
        %s1278 = smul.u32 16, %s21
        %p1279 = scmp.lt.s32.totalorder %s1278, 31
        %s1280 = scalar_select %p1279, %s1278, 31
        %s1281 = smul.addr %s1280, 8
        %s1282 = scalar_lea.vmem %s9, %s1281
      $region68: #{dqn_forward.1} parent=63 // pred_fallthru
        _
    $region64: #{dqn_forward.1} parent=5 // pred_fallthru
      _
  $region6: #{dqn_forward.1} parent=0 // loop_footer
    %s19 = sadd.s32 1, %s15
  $region7: #{dqn_forward.1} parent=0 // loop_footer_branch
    %14 = sbr.rel target = $region3
  $region8: #{dqn_forward.1} parent=0 // loop_exit
    _

</llo_original>
